<compile_context>
chip_gen: v7x
topology: tpu7x:2x2x1
jax: 0.10.0
libtpu: 0.0.40
codegen_flags: <defaults>
</compile_context>

<pallas_src>
import functools
import math

import jax
import jax.numpy as jnp
from jax.experimental import pallas as pl
from jax.experimental.pallas import tpu as pltpu


def _collapse_permutation(shape, dims):
    """Merge input axes that remain adjacent and in-order under `dims`.

    Returns (collapsed_in_shape, collapsed_dims, collapsed_out_shape).  Only
    free (row-major-preserving) wrapper reshapes are implied.
    """
    groups = []
    for d in dims:
        if groups and d == groups[-1][-1] + 1:
            groups[-1].append(d)
        else:
            groups.append([d])
    groups_in = sorted(groups, key=lambda g: g[0])                 # input order
    in_shape_c = tuple(math.prod(shape[a] for a in g) for g in groups_in)
    rank_of = {tuple(g): i for i, g in enumerate(groups_in)}
    dims_c = tuple(rank_of[tuple(g)] for g in groups)              # output order
    out_shape_c = tuple(in_shape_c[d] for d in dims_c)
    return in_shape_c, dims_c, out_shape_c


def _vmem_budget(itemsize):
    """(vmem_limit_bytes, per-block byte budget) for this TPU generation."""
    try:
        cap = int(pltpu.get_tpu_info().vmem_capacity_bytes)
    except Exception:  # pragma: no cover - interpret mode / older jax
        cap = 64 * 1024 * 1024
    # 3/4 of physical VMEM: 64 MiB on v5e/v6e (128 MiB phys), 48 MiB on v7x (64 MiB).
    vmem_limit = min((cap * 3) // 4, 64 * 1024 * 1024)
    # in-block + out-block, each double-buffered (~4x live) + compiler scratch.
    block_budget = min(vmem_limit // 8, 4 * 1024 * 1024)
    return vmem_limit, max(block_budget, 128 * itemsize)


def _num_tensorcores():
    """Best-effort TensorCore count; defaults to 2 (extra steps are ~free on 1-TC chips)."""
    try:
        info = pltpu.get_tpu_info()
        for attr in ("num_tensorcores", "tensorcores_per_chip", "num_cores",
                     "cores_per_chip"):
            v = getattr(info, attr, None)
            if isinstance(v, int) and 0 < v <= 16:
                return v
    except Exception:  # pragma: no cover
        pass
    return 2


def _desired_block_bytes(total_bytes, block_budget, num_cores):
    """Single step for tiny tensors; otherwise >= 4 steps per TensorCore with
    blocks kept >= ~1 MiB (and <= the VMEM block budget)."""
    if total_bytes <= (2 << 20):
        return total_bytes
    steps = 4 * max(num_cores, 1)
    per_step = max(total_bytes // steps, 1 << 20)
    return min(per_step, block_budget)


def _choose_tiles(in_shape_c, dims_c, itemsize, desired_bytes, block_budget):
    """Per-(collapsed)-axis tile sizes honoring the (sublane, 128) layout rules.

    Shrink order: free axes (any tile) -> sublane axes (dtype-sublane
    multiples) -> input lane axis -> output lane axis (kept wide longest so
    stores stay unmasked / lane-dense).
    """
    nd = len(in_shape_c)
    sub_mult = max(8, 32 // max(itemsize, 1))
    in_minor, in_sub = nd - 1, nd - 2
    out_minor, out_sub = dims_c[-1], dims_c[-2]

    def gran(a):
        if a in (in_minor, out_minor):
            return 128
        if a in (in_sub, out_sub):
            return sub_mult
        return 1

    tiles = list(in_shape_c)

    def block_bytes():
        return math.prod(tiles) * itemsize

    def shrink(axis, target_bytes, g):
        bb = block_bytes()
        if bb <= target_bytes or in_shape_c[axis] <= g:
            return
        per_unit = bb // tiles[axis]
        want = target_bytes // max(per_unit, 1)
        tiles[axis] = min(tiles[axis], max(g, (want // g) * g))

    free = sorted((a for a in range(nd) if gran(a) == 1),
                  key=lambda a: -in_shape_c[a])
    subs = [a for a in dict.fromkeys((out_sub, in_sub)) if gran(a) == sub_mult]
    lanes = [a for a in dict.fromkeys((in_minor, out_minor))]
    if out_minor in lanes:                         # shrink output lane axis last
        lanes = [a for a in lanes if a != out_minor] + [out_minor]

    for a in free + subs + lanes:
        shrink(a, desired_bytes, gran(a))

    # Re-check against the VMEM budget: if dtype-sublane granularity left the
    # block too large, relax sublane tiles down to the hard (8, 128) floor.
    if block_bytes() > block_budget:
        for a in subs:
            shrink(a, block_budget, 8)

    return tuple(tiles)


def _permute_kernel(x_ref, o_ref, *, dims):
    # Pure relayout of the VMEM tile; Mosaic lowers the lane/sublane moves to
    # the XLU.  Nothing else to compute.
    o_ref[...] = jnp.transpose(x_ref[...], dims)


def pallas_permute(x, dims, *, block_bytes_hint=None):
    """torch.permute(x, dims) implemented as a Pallas TPU kernel."""
    ndim = x.ndim
    dims = tuple(int(d) % ndim for d in dims)
    assert sorted(dims) == list(range(ndim)), "dims must be a permutation"
    out_shape = tuple(x.shape[d] for d in dims)

    if ndim <= 1 or dims == tuple(range(ndim)):
        return x                                          # identity permutation
    if x.size == 0:
        return jnp.transpose(x, dims)                     # degenerate (empty)

    in_shape_c, dims_c, out_shape_c = _collapse_permutation(x.shape, dims)
    nd = len(in_shape_c)
    if dims_c == tuple(range(nd)):
        return jnp.reshape(x, out_shape)                  # free metadata reshape

    itemsize = x.dtype.itemsize
    sub_mult = max(8, 32 // max(itemsize, 1))
    out_minor = dims_c[-1]

    # Lane-density guard (perf, not correctness): a tiny collapsed output
    # minor (e.g. C=4 f32 for NCHW->NHWC) leaves every output vreg ~C/128
    # occupied (masked vst + padded XLU), so XLA's native transpose wins on
    # every generation.
    # TODO(synk): for bf16/int8, pltpu.bitcast-pack C elements into 32-bit
    # words and run the relayout on the packed view instead of falling back.
    if in_shape_c[out_minor] < sub_mult:
        return jnp.transpose(x, dims)

    total_bytes = x.size * itemsize
    vmem_limit, block_budget = _vmem_budget(itemsize)
    desired = (int(block_bytes_hint) if block_bytes_hint is not None
               else _desired_block_bytes(total_bytes, block_budget,
                                         _num_tensorcores()))
    desired = max(min(desired, block_budget), 128 * itemsize)

    tiles = _choose_tiles(in_shape_c, dims_c, itemsize, desired, block_budget)

    grid_axes = [a for a in range(nd) if tiles[a] < in_shape_c[a]]
    grid = (tuple(pl.cdiv(in_shape_c[a], tiles[a]) for a in grid_axes)
            if grid_axes else (1,))
    ax_to_grid = {a: g for g, a in enumerate(grid_axes)}

    def in_index_map(*gidx):
        return tuple(gidx[ax_to_grid[a]] if a in ax_to_grid else 0
                     for a in range(nd))

    def out_index_map(*gidx):
        return tuple(gidx[ax_to_grid[d]] if d in ax_to_grid else 0
                     for d in dims_c)

    in_block = tuple(tiles)
    out_block = tuple(tiles[d] for d in dims_c)

    kernel = functools.partial(_permute_kernel, dims=dims_c)

    out_c = pl.pallas_call(
        kernel,
        out_shape=jax.ShapeDtypeStruct(out_shape_c, x.dtype),
        grid_spec=pltpu.PrefetchScalarGridSpec(
            num_scalar_prefetch=0,
            grid=grid,
            in_specs=[pl.BlockSpec(in_block, in_index_map)],
            out_specs=pl.BlockSpec(out_block, out_index_map),
        ),
        compiler_params=pltpu.CompilerParams(
            dimension_semantics=("parallel",) * len(grid),
            vmem_limit_bytes=vmem_limit,
        ),
        cost_estimate=pl.CostEstimate(
            flops=0, transcendentals=0, bytes_accessed=2 * total_bytes),
    )(jnp.reshape(x, in_shape_c))

    return jnp.reshape(out_c, out_shape)


class Permute:
    """Mirror of the PyTorch module: Permute(dims)(x) == torch.permute(x, dims)."""

    def __init__(self, dims):
        self.dims = tuple(dims)

    def __call__(self, x):
        return pallas_permute(x, self.dims)


if __name__ == "__main__":
    key = jax.random.PRNGKey(0)
    keys = jax.random.split(key, 6)

    def check(x, dims, **kw):
        out = jax.block_until_ready(pallas_permute(x, dims, **kw))
        ref = jnp.transpose(x, dims)
        assert out.shape == ref.shape and out.dtype == ref.dtype
        assert bool(jnp.array_equal(out, ref)), \
            f"mismatch for dims={dims}, shape={x.shape}"

    # 1) Canonical module use: NCHW -> NHWC.  C=4 is below the lane-density
    #    threshold, so this routes to the XLA-native fallback (review opt. c).
    check(jax.random.normal(keys[0], (2, 4, 16, 16), dtype=jnp.float32),
          (0, 2, 3, 1))

    # 2) NCHW -> NHWC with a lane-dense channel dim: Pallas batched relayout,
    #    single grid step (fits one block).
    x2 = jax.random.normal(keys[1], (2, 128, 16, 16), dtype=jnp.float32)
    check(x2, (0, 2, 3, 1))

    # 3) Same permutation forced onto a multi-step tiled grid (exercises the
    #    pipelined path that large tensors take).
    check(x2, (0, 2, 3, 1), block_bytes_hint=64 * 1024)

    # 4) Fully-permuted 2-D transpose on the (tr, tc) lane-dense tiled path.
    x4 = jax.random.normal(keys[2], (512, 384), dtype=jnp.float32)
    check(x4, (1, 0), block_bytes_hint=128 * 1024)

    # 5) Leading-axis move with the minor dim preserved (dense loads + stores).
    check(jax.random.normal(keys[3], (8, 16, 128), dtype=jnp.float32),
          (1, 0, 2))

    # 6) Permutation that moves the minor axis to the front (small-block path).
    check(jax.random.normal(keys[4], (4, 8, 16), dtype=jnp.float32), (2, 0, 1))

    # 7) Identity permutation.
    check(jax.random.normal(keys[5], (2, 4, 8), dtype=jnp.float32), (0, 1, 2))

    print("KERNEL_OK")
</pallas_src>

<mosaic_0001>
module attributes {stable_mosaic.version = 11 : i64} {
  func.func @_permute_kernel(%arg0: i32, %arg1: memref<2x128x256xf32, #tpu.memory_space<vmem>>, %arg2: memref<2x256x128xf32, #tpu.memory_space<vmem>>) attributes {dimension_semantics = [#tpu.dimension_semantics<parallel>], iteration_bounds = array<i64: 1>, scalar_prefetch = 0 : i64, scratch_operands = 0 : i64, tpu.core_type = #tpu.core_type<tc>, window_params = [{pipeline_mode = #tpu.pipeline_mode<synchronous>, transform_indices = @transform_0, window_bounds = array<i64: 2, 128, 256>}, {pipeline_mode = #tpu.pipeline_mode<synchronous>, transform_indices = @transform_1, window_bounds = array<i64: 2, 256, 128>}]} {
    %c0 = arith.constant 0 : index
    %c0_0 = arith.constant 0 : index
    %c0_1 = arith.constant 0 : index
    %0 = vector.load %arg1[%c0, %c0_0, %c0_1] : memref<2x128x256xf32, #tpu.memory_space<vmem>>, vector<2x128x256xf32>
    %1 = tpu.transpose %0, [0, 2, 1] : vector<2x128x256xf32> -> vector<2x256x128xf32>
    %c0_2 = arith.constant 0 : index
    %c0_3 = arith.constant 0 : index
    %c0_4 = arith.constant 0 : index
    %2 = vector.load %arg2[%c0_2, %c0_3, %c0_4] : memref<2x256x128xf32, #tpu.memory_space<vmem>>, vector<2x256x128xf32>
    tpu.vector_store %arg2[%c0_2, %c0_3, %c0_4], %1 {strides = array<i32>} : memref<2x256x128xf32, #tpu.memory_space<vmem>>, vector<2x256x128xf32>,
    return
  }
  func.func @transform_0(%arg0: i32) -> (i32, i32, i32) {
    %c0_i32 = arith.constant 0 : i32
    %c0_i32_0 = arith.constant 0 : i32
    %c0_i32_1 = arith.constant 0 : i32
    %c0_i32_2 = arith.constant 0 : i32
    return %c0_i32, %c0_i32_0, %c0_i32_1 : i32, i32, i32
  }
  func.func @transform_1(%arg0: i32) -> (i32, i32, i32) {
    %c0_i32 = arith.constant 0 : i32
    %c0_i32_0 = arith.constant 0 : i32
    %c0_i32_1 = arith.constant 0 : i32
    %c0_i32_2 = arith.constant 0 : i32
    return %c0_i32, %c0_i32_0, %c0_i32_1 : i32, i32, i32
  }
}

</mosaic_0001>

<llo_original>
// kernel: tpu_custom_call.1
$region0: #{tpu_custom_call.1}
  #allocation0 [shape = 'u32[]', space=smem, size = 0x4, offset = 0x4, fixed_abs, tag = 'smem constant byte address 0x4 - core index']
  #allocation1 [shape = 'u32[144,128]{1,0:T(1,128)}', space=vmem, size = 0x12000, scoped, tag = 'internal scratch']
  %s0 = inlined_call_operand.hbm [shape: f32[2,128,256], index: 0, kind: input, shape index: {}]
  %s1 = inlined_call_operand.hbm [shape: f32[2,256,128], index: 1, kind: output, shape index: {}]
  %s2 = sld [smem:[#allocation0]]
  $region18: #{tpu_custom_call.1} parent=0
    _
  %s4 = ssub.s32 1, %s2
  %s5 = scalar_select 0, %s4, %s2
  $region1: #{tpu_custom_call.1} parent=0
    #allocation2 [shape = 'u8[262144]{0}', space=vmem, size = 0x40000, scoped, tag = 'input window, operand 0, single buffered']
    #allocation3 [shape = 's32[1]{0}', space=sflag, size = 0x4, scoped, tag = 'scoped memory for tpu_custom_call.1']
    #allocation4 [shape = 's32[1]{0}', space=sflag, size = 0x4, scoped, tag = 'scoped memory for tpu_custom_call.1']
    #allocation5 [shape = 'u8[262144]{0}', space=vmem, size = 0x40000, scoped, tag = 'output window, operand 0, single buffered']
    %6 = vsyncpa [#allocation3], 0
    %7 = vsyncpa [#allocation4], 0
    // Predicated region
    $region2: #{tpu_custom_call.1} parent=1 // pred_check
      _
    $region3: #{tpu_custom_call.1} parent=1 // pred_check_branch
      %9 = sbr.rel (0) target = $region5
    $region4: #{tpu_custom_call.1} parent=1 // pred_region
      %s11 = ssub.s32 8192, 8192
      %12 = vsyncadd [#allocation3], %s11
      %s13 = sshll.u32 [#allocation2], 4
      %s14 = int_to_ptr.vmem [resolvable:$true] %s13
      %19 = dma.hbm_to_vmem [thread:$0]  %s0, 8192, %s14, [#allocation3], 256, 256, 16
    $region5: #{tpu_custom_call.1} parent=1 // pred_fallthru
      _
    // Predicated region
    $region6: #{tpu_custom_call.1} parent=1 // pred_check
      _
    $region7: #{tpu_custom_call.1} parent=1 // pred_check_branch
      %21 = sbr.rel (0) target = $region9
    $region8: #{tpu_custom_call.1} parent=1 // pred_region
      %22 = dma.done [#allocation3], 8192
    $region9: #{tpu_custom_call.1} parent=1 // pred_fallthru
      _
    %v23 = vld [vmem:[#allocation2] sm:$0xff]
    %v24 = vld [vmem:[#allocation2 + $0x8] sm:$0xff]
    %v25 = vld [vmem:[#allocation2 + $0x10] sm:$0xff]
    %v26 = vld [vmem:[#allocation2 + $0x18] sm:$0xff]
    %v27 = vld [vmem:[#allocation2 + $0x20] sm:$0xff]
    %v28 = vld [vmem:[#allocation2 + $0x28] sm:$0xff]
    %v29 = vld [vmem:[#allocation2 + $0x30] sm:$0xff]
    %v30 = vld [vmem:[#allocation2 + $0x38] sm:$0xff]
    %v31 = vld [vmem:[#allocation2 + $0x40] sm:$0xff]
    %v32 = vld [vmem:[#allocation2 + $0x48] sm:$0xff]
    %v33 = vld [vmem:[#allocation2 + $0x50] sm:$0xff]
    %v34 = vld [vmem:[#allocation2 + $0x58] sm:$0xff]
    %v35 = vld [vmem:[#allocation2 + $0x60] sm:$0xff]
    %v36 = vld [vmem:[#allocation2 + $0x68] sm:$0xff]
    %v37 = vld [vmem:[#allocation2 + $0x70] sm:$0xff]
    %v38 = vld [vmem:[#allocation2 + $0x78] sm:$0xff]
    %v39 = vld [vmem:[#allocation2 + $0x80] sm:$0xff]
    %v40 = vld [vmem:[#allocation2 + $0x88] sm:$0xff]
    %v41 = vld [vmem:[#allocation2 + $0x90] sm:$0xff]
    %v42 = vld [vmem:[#allocation2 + $0x98] sm:$0xff]
    %v43 = vld [vmem:[#allocation2 + $0xa0] sm:$0xff]
    %v44 = vld [vmem:[#allocation2 + $0xa8] sm:$0xff]
    %v45 = vld [vmem:[#allocation2 + $0xb0] sm:$0xff]
    %v46 = vld [vmem:[#allocation2 + $0xb8] sm:$0xff]
    %v47 = vld [vmem:[#allocation2 + $0xc0] sm:$0xff]
    %v48 = vld [vmem:[#allocation2 + $0xc8] sm:$0xff]
    %v49 = vld [vmem:[#allocation2 + $0xd0] sm:$0xff]
    %v50 = vld [vmem:[#allocation2 + $0xd8] sm:$0xff]
    %v51 = vld [vmem:[#allocation2 + $0xe0] sm:$0xff]
    %v52 = vld [vmem:[#allocation2 + $0xe8] sm:$0xff]
    %v53 = vld [vmem:[#allocation2 + $0xf0] sm:$0xff]
    %v54 = vld [vmem:[#allocation2 + $0xf8] sm:$0xff]
    %v55 = vld [vmem:[#allocation2 + $0x100] sm:$0xff]
    %v56 = vld [vmem:[#allocation2 + $0x108] sm:$0xff]
    %v57 = vld [vmem:[#allocation2 + $0x110] sm:$0xff]
    %v58 = vld [vmem:[#allocation2 + $0x118] sm:$0xff]
    %v59 = vld [vmem:[#allocation2 + $0x120] sm:$0xff]
    %v60 = vld [vmem:[#allocation2 + $0x128] sm:$0xff]
    %v61 = vld [vmem:[#allocation2 + $0x130] sm:$0xff]
    %v62 = vld [vmem:[#allocation2 + $0x138] sm:$0xff]
    %v63 = vld [vmem:[#allocation2 + $0x140] sm:$0xff]
    %v64 = vld [vmem:[#allocation2 + $0x148] sm:$0xff]
    %v65 = vld [vmem:[#allocation2 + $0x150] sm:$0xff]
    %v66 = vld [vmem:[#allocation2 + $0x158] sm:$0xff]
    %v67 = vld [vmem:[#allocation2 + $0x160] sm:$0xff]
    %v68 = vld [vmem:[#allocation2 + $0x168] sm:$0xff]
    %v69 = vld [vmem:[#allocation2 + $0x170] sm:$0xff]
    %v70 = vld [vmem:[#allocation2 + $0x178] sm:$0xff]
    %v71 = vld [vmem:[#allocation2 + $0x180] sm:$0xff]
    %v72 = vld [vmem:[#allocation2 + $0x188] sm:$0xff]
    %v73 = vld [vmem:[#allocation2 + $0x190] sm:$0xff]
    %v74 = vld [vmem:[#allocation2 + $0x198] sm:$0xff]
    %v75 = vld [vmem:[#allocation2 + $0x1a0] sm:$0xff]
    %v76 = vld [vmem:[#allocation2 + $0x1a8] sm:$0xff]
    %v77 = vld [vmem:[#allocation2 + $0x1b0] sm:$0xff]
    %v78 = vld [vmem:[#allocation2 + $0x1b8] sm:$0xff]
    %v79 = vld [vmem:[#allocation2 + $0x1c0] sm:$0xff]
    %v80 = vld [vmem:[#allocation2 + $0x1c8] sm:$0xff]
    %v81 = vld [vmem:[#allocation2 + $0x1d0] sm:$0xff]
    %v82 = vld [vmem:[#allocation2 + $0x1d8] sm:$0xff]
    %v83 = vld [vmem:[#allocation2 + $0x1e0] sm:$0xff]
    %v84 = vld [vmem:[#allocation2 + $0x1e8] sm:$0xff]
    %v85 = vld [vmem:[#allocation2 + $0x1f0] sm:$0xff]
    %v86 = vld [vmem:[#allocation2 + $0x1f8] sm:$0xff]
    %87 = vxpose.xlu0.b32.start [1/16] %v23, 128
    %88 = vxpose.xlu0.b32.cont [2/16] %v25, 128
    %89 = vxpose.xlu0.b32.cont [3/16] %v27, 128
    %90 = vxpose.xlu0.b32.cont [4/16] %v29, 128
    %91 = vxpose.xlu0.b32.cont [5/16] %v31, 128
    %92 = vxpose.xlu0.b32.cont [6/16] %v33, 128
    %93 = vxpose.xlu0.b32.cont [7/16] %v35, 128
    %94 = vxpose.xlu0.b32.cont [8/16] %v37, 128
    %95 = vxpose.xlu0.b32.cont [9/16] %v39, 128
    %96 = vxpose.xlu0.b32.cont [10/16] %v41, 128
    %97 = vxpose.xlu0.b32.cont [11/16] %v43, 128
    %98 = vxpose.xlu0.b32.cont [12/16] %v45, 128
    %99 = vxpose.xlu0.b32.cont [13/16] %v47, 128
    %100 = vxpose.xlu0.b32.cont [14/16] %v49, 128
    %101 = vxpose.xlu0.b32.cont [15/16] %v51, 128
    %102 = vxpose.xlu0.b32.end [16/16] %v53, 128
    %v103 = vpop.trf.xlu0
    %v104 = vpop.trf.xlu0
    %v105 = vpop.trf.xlu0
    %v106 = vpop.trf.xlu0
    %v107 = vpop.trf.xlu0
    %v108 = vpop.trf.xlu0
    %v109 = vpop.trf.xlu0
    %v110 = vpop.trf.xlu0
    %v111 = vpop.trf.xlu0
    %v112 = vpop.trf.xlu0
    %v113 = vpop.trf.xlu0
    %v114 = vpop.trf.xlu0
    %v115 = vpop.trf.xlu0
    %v116 = vpop.trf.xlu0
    %v117 = vpop.trf.xlu0
    %v118 = vpop.trf.xlu0
    %119 = vxpose.xlu0.b32.start [1/16] %v24, 128
    %120 = vxpose.xlu0.b32.cont [2/16] %v26, 128
    %121 = vxpose.xlu0.b32.cont [3/16] %v28, 128
    %122 = vxpose.xlu0.b32.cont [4/16] %v30, 128
    %123 = vxpose.xlu0.b32.cont [5/16] %v32, 128
    %124 = vxpose.xlu0.b32.cont [6/16] %v34, 128
    %125 = vxpose.xlu0.b32.cont [7/16] %v36, 128
    %126 = vxpose.xlu0.b32.cont [8/16] %v38, 128
    %127 = vxpose.xlu0.b32.cont [9/16] %v40, 128
    %128 = vxpose.xlu0.b32.cont [10/16] %v42, 128
    %129 = vxpose.xlu0.b32.cont [11/16] %v44, 128
    %130 = vxpose.xlu0.b32.cont [12/16] %v46, 128
    %131 = vxpose.xlu0.b32.cont [13/16] %v48, 128
    %132 = vxpose.xlu0.b32.cont [14/16] %v50, 128
    %133 = vxpose.xlu0.b32.cont [15/16] %v52, 128
    %134 = vxpose.xlu0.b32.end [16/16] %v54, 128
    %v135 = vpop.trf.xlu0
    %v136 = vpop.trf.xlu0
    %v137 = vpop.trf.xlu0
    %v138 = vpop.trf.xlu0
    %v139 = vpop.trf.xlu0
    %v140 = vpop.trf.xlu0
    %v141 = vpop.trf.xlu0
    %v142 = vpop.trf.xlu0
    %v143 = vpop.trf.xlu0
    %v144 = vpop.trf.xlu0
    %v145 = vpop.trf.xlu0
    %v146 = vpop.trf.xlu0
    %v147 = vpop.trf.xlu0
    %v148 = vpop.trf.xlu0
    %v149 = vpop.trf.xlu0
    %v150 = vpop.trf.xlu0
    %151 = vxpose.xlu0.b32.start [1/16] %v55, 128
    %152 = vxpose.xlu0.b32.cont [2/16] %v57, 128
    %153 = vxpose.xlu0.b32.cont [3/16] %v59, 128
    %154 = vxpose.xlu0.b32.cont [4/16] %v61, 128
    %155 = vxpose.xlu0.b32.cont [5/16] %v63, 128
    %156 = vxpose.xlu0.b32.cont [6/16] %v65, 128
    %157 = vxpose.xlu0.b32.cont [7/16] %v67, 128
    %158 = vxpose.xlu0.b32.cont [8/16] %v69, 128
    %159 = vxpose.xlu0.b32.cont [9/16] %v71, 128
    %160 = vxpose.xlu0.b32.cont [10/16] %v73, 128
    %161 = vxpose.xlu0.b32.cont [11/16] %v75, 128
    %162 = vxpose.xlu0.b32.cont [12/16] %v77, 128
    %163 = vxpose.xlu0.b32.cont [13/16] %v79, 128
    %164 = vxpose.xlu0.b32.cont [14/16] %v81, 128
    %165 = vxpose.xlu0.b32.cont [15/16] %v83, 128
    %166 = vxpose.xlu0.b32.end [16/16] %v85, 128
    %v167 = vpop.trf.xlu0
    %v168 = vpop.trf.xlu0
    %v169 = vpop.trf.xlu0
    %v170 = vpop.trf.xlu0
    %v171 = vpop.trf.xlu0
    %v172 = vpop.trf.xlu0
    %v173 = vpop.trf.xlu0
    %v174 = vpop.trf.xlu0
    %v175 = vpop.trf.xlu0
    %v176 = vpop.trf.xlu0
    %v177 = vpop.trf.xlu0
    %v178 = vpop.trf.xlu0
    %v179 = vpop.trf.xlu0
    %v180 = vpop.trf.xlu0
    %v181 = vpop.trf.xlu0
    %v182 = vpop.trf.xlu0
    %183 = vxpose.xlu0.b32.start [1/16] %v56, 128
    %184 = vxpose.xlu0.b32.cont [2/16] %v58, 128
    %185 = vxpose.xlu0.b32.cont [3/16] %v60, 128
    %186 = vxpose.xlu0.b32.cont [4/16] %v62, 128
    %187 = vxpose.xlu0.b32.cont [5/16] %v64, 128
    %188 = vxpose.xlu0.b32.cont [6/16] %v66, 128
    %189 = vxpose.xlu0.b32.cont [7/16] %v68, 128
    %190 = vxpose.xlu0.b32.cont [8/16] %v70, 128
    %191 = vxpose.xlu0.b32.cont [9/16] %v72, 128
    %192 = vxpose.xlu0.b32.cont [10/16] %v74, 128
    %193 = vxpose.xlu0.b32.cont [11/16] %v76, 128
    %194 = vxpose.xlu0.b32.cont [12/16] %v78, 128
    %195 = vxpose.xlu0.b32.cont [13/16] %v80, 128
    %196 = vxpose.xlu0.b32.cont [14/16] %v82, 128
    %197 = vxpose.xlu0.b32.cont [15/16] %v84, 128
    %198 = vxpose.xlu0.b32.end [16/16] %v86, 128
    %v199 = vpop.trf.xlu0
    %v200 = vpop.trf.xlu0
    %v201 = vpop.trf.xlu0
    %v202 = vpop.trf.xlu0
    %v203 = vpop.trf.xlu0
    %v204 = vpop.trf.xlu0
    %v205 = vpop.trf.xlu0
    %v206 = vpop.trf.xlu0
    %v207 = vpop.trf.xlu0
    %v208 = vpop.trf.xlu0
    %v209 = vpop.trf.xlu0
    %v210 = vpop.trf.xlu0
    %v211 = vpop.trf.xlu0
    %v212 = vpop.trf.xlu0
    %v213 = vpop.trf.xlu0
    %v214 = vpop.trf.xlu0
    %215 = vst [vmem:[#allocation5] sm:$0xff] %v103
    %216 = vst [vmem:[#allocation5 + $0x8] sm:$0xff] %v104
    %217 = vst [vmem:[#allocation5 + $0x10] sm:$0xff] %v105
    %218 = vst [vmem:[#allocation5 + $0x18] sm:$0xff] %v106
    %219 = vst [vmem:[#allocation5 + $0x20] sm:$0xff] %v107
    %220 = vst [vmem:[#allocation5 + $0x28] sm:$0xff] %v108
    %221 = vst [vmem:[#allocation5 + $0x30] sm:$0xff] %v109
    %222 = vst [vmem:[#allocation5 + $0x38] sm:$0xff] %v110
    %223 = vst [vmem:[#allocation5 + $0x40] sm:$0xff] %v111
    %224 = vst [vmem:[#allocation5 + $0x48] sm:$0xff] %v112
    %225 = vst [vmem:[#allocation5 + $0x50] sm:$0xff] %v113
    %226 = vst [vmem:[#allocation5 + $0x58] sm:$0xff] %v114
    %227 = vst [vmem:[#allocation5 + $0x60] sm:$0xff] %v115
    %228 = vst [vmem:[#allocation5 + $0x68] sm:$0xff] %v116
    %229 = vst [vmem:[#allocation5 + $0x70] sm:$0xff] %v117
    %230 = vst [vmem:[#allocation5 + $0x78] sm:$0xff] %v118
    %231 = vst [vmem:[#allocation5 + $0x80] sm:$0xff] %v135
    %232 = vst [vmem:[#allocation5 + $0x88] sm:$0xff] %v136
    %233 = vst [vmem:[#allocation5 + $0x90] sm:$0xff] %v137
    %234 = vst [vmem:[#allocation5 + $0x98] sm:$0xff] %v138
    %235 = vst [vmem:[#allocation5 + $0xa0] sm:$0xff] %v139
    %236 = vst [vmem:[#allocation5 + $0xa8] sm:$0xff] %v140
    %237 = vst [vmem:[#allocation5 + $0xb0] sm:$0xff] %v141
    %238 = vst [vmem:[#allocation5 + $0xb8] sm:$0xff] %v142
    %239 = vst [vmem:[#allocation5 + $0xc0] sm:$0xff] %v143
    %240 = vst [vmem:[#allocation5 + $0xc8] sm:$0xff] %v144
    %241 = vst [vmem:[#allocation5 + $0xd0] sm:$0xff] %v145
    %242 = vst [vmem:[#allocation5 + $0xd8] sm:$0xff] %v146
    %243 = vst [vmem:[#allocation5 + $0xe0] sm:$0xff] %v147
    %244 = vst [vmem:[#allocation5 + $0xe8] sm:$0xff] %v148
    %245 = vst [vmem:[#allocation5 + $0xf0] sm:$0xff] %v149
    %246 = vst [vmem:[#allocation5 + $0xf8] sm:$0xff] %v150
    %247 = vst [vmem:[#allocation5 + $0x100] sm:$0xff] %v167
    %248 = vst [vmem:[#allocation5 + $0x108] sm:$0xff] %v168
    %249 = vst [vmem:[#allocation5 + $0x110] sm:$0xff] %v169
    %250 = vst [vmem:[#allocation5 + $0x118] sm:$0xff] %v170
    %251 = vst [vmem:[#allocation5 + $0x120] sm:$0xff] %v171
    %252 = vst [vmem:[#allocation5 + $0x128] sm:$0xff] %v172
    %253 = vst [vmem:[#allocation5 + $0x130] sm:$0xff] %v173
    %254 = vst [vmem:[#allocation5 + $0x138] sm:$0xff] %v174
    %255 = vst [vmem:[#allocation5 + $0x140] sm:$0xff] %v175
    %256 = vst [vmem:[#allocation5 + $0x148] sm:$0xff] %v176
    %257 = vst [vmem:[#allocation5 + $0x150] sm:$0xff] %v177
    %258 = vst [vmem:[#allocation5 + $0x158] sm:$0xff] %v178
    %259 = vst [vmem:[#allocation5 + $0x160] sm:$0xff] %v179
    %260 = vst [vmem:[#allocation5 + $0x168] sm:$0xff] %v180
    %261 = vst [vmem:[#allocation5 + $0x170] sm:$0xff] %v181
    %262 = vst [vmem:[#allocation5 + $0x178] sm:$0xff] %v182
    %263 = vst [vmem:[#allocation5 + $0x180] sm:$0xff] %v199
    %264 = vst [vmem:[#allocation5 + $0x188] sm:$0xff] %v200
    %265 = vst [vmem:[#allocation5 + $0x190] sm:$0xff] %v201
    %266 = vst [vmem:[#allocation5 + $0x198] sm:$0xff] %v202
    %267 = vst [vmem:[#allocation5 + $0x1a0] sm:$0xff] %v203
    %268 = vst [vmem:[#allocation5 + $0x1a8] sm:$0xff] %v204
    %269 = vst [vmem:[#allocation5 + $0x1b0] sm:$0xff] %v205
    %270 = vst [vmem:[#allocation5 + $0x1b8] sm:$0xff] %v206
    %271 = vst [vmem:[#allocation5 + $0x1c0] sm:$0xff] %v207
    %272 = vst [vmem:[#allocation5 + $0x1c8] sm:$0xff] %v208
    %273 = vst [vmem:[#allocation5 + $0x1d0] sm:$0xff] %v209
    %274 = vst [vmem:[#allocation5 + $0x1d8] sm:$0xff] %v210
    %275 = vst [vmem:[#allocation5 + $0x1e0] sm:$0xff] %v211
    %276 = vst [vmem:[#allocation5 + $0x1e8] sm:$0xff] %v212
    %277 = vst [vmem:[#allocation5 + $0x1f0] sm:$0xff] %v213
    %278 = vst [vmem:[#allocation5 + $0x1f8] sm:$0xff] %v214
    // Predicated region
    $region10: #{tpu_custom_call.1} parent=1 // pred_check
      _
    $region11: #{tpu_custom_call.1} parent=1 // pred_check_branch
      %280 = sbr.rel (0) target = $region13
    $region12: #{tpu_custom_call.1} parent=1 // pred_region
      %s282 = ssub.s32 8192, 8192
      %283 = vsyncadd [#allocation4], %s282
      %s284 = sshll.u32 [#allocation5], 4
      %s285 = int_to_ptr.vmem [resolvable:$true] %s284
      %290 = dma.vmem_to_hbm [thread:$0]  %s285, 8192, %s1, [#allocation4], 128, 128, 8
    $region13: #{tpu_custom_call.1} parent=1 // pred_fallthru
      _
    // Predicated region
    $region14: #{tpu_custom_call.1} parent=1 // pred_check
      _
    $region15: #{tpu_custom_call.1} parent=1 // pred_check_branch
      %292 = sbr.rel (0) target = $region17
    $region16: #{tpu_custom_call.1} parent=1 // pred_region
      %293 = dma.done [#allocation4], 8192
    $region17: #{tpu_custom_call.1} parent=1 // pred_fallthru
      _
    %294 = vsyncpa [#allocation3], 1
    %295 = vsyncpa [#allocation4], 1

</llo_original>
